<compile_context>
chip_gen: v6e
topology: v6e:2x2x1
jax: 0.10.0
libtpu: 0.0.40
codegen_flags: <defaults>
</compile_context>

<pallas_src>
import functools

import jax
import jax.numpy as jnp
from jax.experimental import pallas as pl
from jax.experimental.pallas import tpu as pltpu


def _round_up(a: int, b: int) -> int:
    return ((a + b - 1) // b) * b


def _choose_tile(dim: int, tile_max: int, align: int):
    """Pick an `align`-aligned tile size ~<= tile_max with minimal padding.

    Returns (tile, padded_dim) with padded_dim % tile == 0.
    """
    tile_max = max(tile_max, align)
    num_tiles = -(-dim // tile_max)                 # ceil(dim / tile_max)
    tile = _round_up(-(-dim // num_tiles), align)   # ceil(dim / num_tiles), aligned
    return tile, num_tiles * tile


def _matmul_bias_kernel_single(x_ref, w_ref, b_ref, o_ref):
    """Full K in one block: single MXU push per (i, j) tile, bias fused."""
    o_ref[...] = (
        jnp.dot(x_ref[...], w_ref[...], preferred_element_type=jnp.float32)
        + b_ref[...]
    ).astype(o_ref.dtype)


def _matmul_bias_kernel_ktiled(x_ref, w_ref, b_ref, o_ref, acc_ref):
    """K split across grid axis 2: accumulate in f32 VMEM scratch."""
    k = pl.program_id(2)

    @pl.when(k == 0)
    def _():
        acc_ref[...] = jnp.zeros_like(acc_ref)

    acc_ref[...] += jnp.dot(
        x_ref[...], w_ref[...], preferred_element_type=jnp.float32
    )

    @pl.when(k == pl.num_programs(2) - 1)
    def _():
        o_ref[...] = (acc_ref[...] + b_ref[...]).astype(o_ref.dtype)


@functools.partial(
    jax.jit,
    static_argnames=("tm_max", "tn_max", "tk_max", "vmem_limit_bytes"),
)
def flatten_head_forward(
    x,
    weight,
    bias,
    *,
    tm_max: int = 1024,
    tn_max: int = 256,
    tk_max: int = 2048,
    vmem_limit_bytes: int = 48 * 1024 * 1024,
):
    """
    x:      [B, n_vars, d_model, patch_num]
    weight: [target_window, nf]   (PyTorch nn.Linear convention, nf = d_model*patch_num)
    bias:   [target_window]
    returns [B, n_vars, target_window]
    """
    B, n_vars, d_model, patch_num = x.shape
    nf = d_model * patch_num
    target_window = weight.shape[0]
    assert weight.shape == (target_window, nf)
    assert bias.shape == (target_window,)

    # Flatten(start_dim=-2) then fold batch dims into M; Linear is x @ W.T + b.
    x2d = x.reshape(B * n_vars, nf)
    wT = weight.T                                    # (nf, target_window)

    M, K, N = B * n_vars, nf, target_window

    # Tile selection: whole M in one tile when possible (weight read once),
    # large 128-aligned K/N tiles, padding instead of divisibility asserts.
    tm, Mp = _choose_tile(M, tm_max, 8)
    tk, Kp = _choose_tile(K, tk_max, 128)
    tn, Np = _choose_tile(N, tn_max, 128)
    num_m, num_n, num_k = Mp // tm, Np // tn, Kp // tk

    # Zero-pad: padded K columns contribute 0 to the dot; padded M rows and
    # N columns are sliced off afterwards.
    x_p = jnp.pad(x2d, ((0, Mp - M), (0, Kp - K)))
    w_p = jnp.pad(wT, ((0, Kp - K), (0, Np - N)))
    b_p = jnp.pad(bias, (0, Np - N)).reshape(1, Np)

    itemsize = jnp.dtype(x.dtype).itemsize
    cost = pl.CostEstimate(
        flops=2 * Mp * Np * Kp,
        transcendentals=0,
        bytes_accessed=itemsize * (Mp * Kp + Kp * Np + Np + Mp * Np),
    )

    out_shape = jax.ShapeDtypeStruct((Mp, Np), x.dtype)

    if num_k == 1:
        # No reduction axis: one dot + fused bias per (i, j) tile.
        out_p = pl.pallas_call(
            _matmul_bias_kernel_single,
            out_shape=out_shape,
            grid_spec=pltpu.PrefetchScalarGridSpec(
                num_scalar_prefetch=0,
                grid=(num_m, num_n),
                in_specs=[
                    pl.BlockSpec((tm, tk), lambda i, j: (i, 0)),
                    pl.BlockSpec((tk, tn), lambda i, j: (0, j)),
                    pl.BlockSpec((1, tn), lambda i, j: (0, j)),
                ],
                out_specs=pl.BlockSpec((tm, tn), lambda i, j: (i, j)),
            ),
            compiler_params=pltpu.CompilerParams(
                dimension_semantics=("parallel", "parallel"),
                vmem_limit_bytes=vmem_limit_bytes,
            ),
            cost_estimate=cost,
        )(x_p, w_p, b_p)
    else:
        # K too large for one tile: accumulate over grid axis 2.
        out_p = pl.pallas_call(
            _matmul_bias_kernel_ktiled,
            out_shape=out_shape,
            grid_spec=pltpu.PrefetchScalarGridSpec(
                num_scalar_prefetch=0,
                grid=(num_m, num_n, num_k),
                in_specs=[
                    pl.BlockSpec((tm, tk), lambda i, j, k: (i, k)),
                    pl.BlockSpec((tk, tn), lambda i, j, k: (k, j)),
                    pl.BlockSpec((1, tn), lambda i, j, k: (0, j)),
                ],
                out_specs=pl.BlockSpec((tm, tn), lambda i, j, k: (i, j)),
                scratch_shapes=[pltpu.VMEM((tm, tn), jnp.float32)],
            ),
            compiler_params=pltpu.CompilerParams(
                dimension_semantics=("parallel", "parallel", "arbitrary"),
                vmem_limit_bytes=vmem_limit_bytes,
            ),
            cost_estimate=cost,
        )(x_p, w_p, b_p)

    out = out_p[:M, :N]
    # TODO(synk): head_dropout > 0.0 (training-mode dropout) not implemented; p=0.0 / eval is identity.
    return out.reshape(B, n_vars, target_window)


if __name__ == "__main__":
    # Small shapes consistent with the module's forward:
    # x: [batch, n_vars, d_model, patch_num]; target_window=96 is deliberately
    # not a multiple of 128 to exercise the padding path.
    B, n_vars, d_model, patch_num = 2, 4, 16, 16
    nf = d_model * patch_num          # 256
    target_window = 96

    key = jax.random.PRNGKey(0)
    kx, kw, kb = jax.random.split(key, 3)

    x = jax.random.normal(kx, (B, n_vars, d_model, patch_num), dtype=jnp.float32)
    # Deterministic init mimicking nn.Linear's uniform(-1/sqrt(nf), 1/sqrt(nf)).
    bound = 1.0 / (nf ** 0.5)
    weight = jax.random.uniform(kw, (target_window, nf), jnp.float32, -bound, bound)
    bias = jax.random.uniform(kb, (target_window,), jnp.float32, -bound, bound)

    # Reference (pure JAX): flatten -> linear (dropout p=0 is identity).
    ref = x.reshape(B, n_vars, nf) @ weight.T + bias

    # Path 1: single-K-tile kernel (nf fits in one tile).
    out = flatten_head_forward(x, weight, bias)
    out = jax.block_until_ready(out)
    assert out.shape == (B, n_vars, target_window)
    assert jnp.allclose(out, ref, atol=1e-4, rtol=1e-4)

    # Path 2: force the K-tiled accumulator kernel (tk_max < nf) to exercise it.
    out2 = flatten_head_forward(x, weight, bias, tk_max=128)
    out2 = jax.block_until_ready(out2)
    assert jnp.allclose(out2, ref, atol=1e-4, rtol=1e-4)

    print("KERNEL_OK")
</pallas_src>

<mosaic_0001>
module attributes {stable_mosaic.version = 11 : i64} {
  func.func @_matmul_bias_kernel_single(%arg0: i32, %arg1: i32, %arg2: memref<8x256xf32, #tpu.memory_space<vmem>>, %arg3: memref<256x128xf32, #tpu.memory_space<vmem>>, %arg4: memref<1x128xf32, #tpu.memory_space<vmem>>, %arg5: memref<8x128xf32, #tpu.memory_space<vmem>>) attributes {dimension_semantics = [#tpu.dimension_semantics<parallel>, #tpu.dimension_semantics<parallel>], iteration_bounds = array<i64: 1, 1>, scalar_prefetch = 0 : i64, scratch_operands = 0 : i64, tpu.core_type = #tpu.core_type<tc>, window_params = [{transform_indices = @transform_0, window_bounds = array<i64: 8, 256>}, {transform_indices = @transform_1, window_bounds = array<i64: 256, 128>}, {transform_indices = @transform_2, window_bounds = array<i64: 1, 128>}, {transform_indices = @transform_3, window_bounds = array<i64: 8, 128>}]} {
    %c0 = arith.constant 0 : index
    %c0_0 = arith.constant 0 : index
    %0 = vector.load %arg2[%c0, %c0_0] : memref<8x256xf32, #tpu.memory_space<vmem>>, vector<8x256xf32>
    %c0_1 = arith.constant 0 : index
    %c0_2 = arith.constant 0 : index
    %1 = vector.load %arg3[%c0_1, %c0_2] : memref<256x128xf32, #tpu.memory_space<vmem>>, vector<256x128xf32>
    %cst = arith.constant dense<0.000000e+00> : vector<8x128xf32>
    %2 = tpu.matmul %0, %1, %cst {dimension_numbers = #tpu.dot_dimension_numbers<[1], [0], [0], [1], [0, 0, 1, 1], [], []>} : vector<8x256xf32>, vector<256x128xf32>, vector<8x128xf32> -> vector<8x128xf32>
    %c0_3 = arith.constant 0 : index
    %c0_4 = arith.constant 0 : index
    %3 = vector.load %arg4[%c0_3, %c0_4] : memref<1x128xf32, #tpu.memory_space<vmem>>, vector<1x128xf32>
    %4 = vector.broadcast %3 : vector<1x128xf32> to vector<8x128xf32>
    %5 = arith.addf %2, %4 : vector<8x128xf32>
    %c0_5 = arith.constant 0 : index
    %c0_6 = arith.constant 0 : index
    %6 = vector.load %arg5[%c0_5, %c0_6] : memref<8x128xf32, #tpu.memory_space<vmem>>, vector<8x128xf32>
    tpu.vector_store %arg5[%c0_5, %c0_6], %5 {strides = array<i32>} : memref<8x128xf32, #tpu.memory_space<vmem>>, vector<8x128xf32>,
    return
  }
  func.func @transform_0(%arg0: i32, %arg1: i32) -> (i32, i32) {
    %c0_i32 = arith.constant 0 : i32
    %c0_i32_0 = arith.constant 0 : i32
    return %arg0, %c0_i32 : i32, i32
  }
  func.func @transform_1(%arg0: i32, %arg1: i32) -> (i32, i32) {
    %c0_i32 = arith.constant 0 : i32
    %c0_i32_0 = arith.constant 0 : i32
    return %c0_i32, %arg1 : i32, i32
  }
  func.func @transform_2(%arg0: i32, %arg1: i32) -> (i32, i32) {
    %c0_i32 = arith.constant 0 : i32
    %c0_i32_0 = arith.constant 0 : i32
    return %c0_i32, %arg1 : i32, i32
  }
  func.func @transform_3(%arg0: i32, %arg1: i32) -> (i32, i32) {
    %c0_i32 = arith.constant 0 : i32
    return %arg0, %arg1 : i32, i32
  }
}

</mosaic_0001>

<llo_original>
// kernel: flatten_head_forward.1
$region0: #{flatten_head_forward.1}
  #allocation0 [shape = 'u32[]', space=smem, size = 0x4, offset = 0x4, fixed_abs, tag = 'smem constant byte address 0x4 - core index']
  #allocation1 [shape = 'u32[144,128]{1,0:T(1,128)}', space=vmem, size = 0x12000, scoped, tag = 'internal scratch']
  %s0 = inlined_call_operand.vmem [shape: f32[8,256], index: 0, kind: input, shape index: {}]
  %s1 = inlined_call_operand.vmem [shape: f32[256,128], index: 1, kind: input, shape index: {}]
  %s2 = inlined_call_operand.vmem [shape: f32[1,128], index: 2, kind: input, shape index: {}]
  %s3 = inlined_call_operand.hbm [shape: f32[8,128], index: 3, kind: output, shape index: {}]
  %s4 = sld [smem:[#allocation0]]
  $region22: #{flatten_head_forward.1} parent=0
    _
  %s6 = ssub.s32 1, %s4
  %s7 = scalar_select 0, %s6, %s4
  $region1: #{flatten_head_forward.1} parent=0
    #allocation2 [shape = 'u8[4096]{0}', space=vmem, size = 0x1000, scoped, tag = 'output window, operand 0, single buffered']
    #allocation3 [shape = 's32[1]{0}', space=sflag, size = 0x4, scoped, tag = 'scoped memory for flatten_head_forward.1']
    %8 = vsyncpa [#allocation3], 0
    // Predicated region
    $region2: #{flatten_head_forward.1} parent=1 // pred_check
      _
    $region3: #{flatten_head_forward.1} parent=1 // pred_check_branch
      %10 = sbr.rel (0) target = $region5
    $region4: #{flatten_head_forward.1} parent=1 // pred_region
      _
    $region5: #{flatten_head_forward.1} parent=1 // pred_fallthru
      _
    // Predicated region
    $region6: #{flatten_head_forward.1} parent=1 // pred_check
      _
    $region7: #{flatten_head_forward.1} parent=1 // pred_check_branch
      %12 = sbr.rel (0) target = $region9
    $region8: #{flatten_head_forward.1} parent=1 // pred_region
      _
    $region9: #{flatten_head_forward.1} parent=1 // pred_fallthru
      _
    // Predicated region
    $region10: #{flatten_head_forward.1} parent=1 // pred_check
      _
    $region11: #{flatten_head_forward.1} parent=1 // pred_check_branch
      %14 = sbr.rel (0) target = $region13
    $region12: #{flatten_head_forward.1} parent=1 // pred_region
      _
    $region13: #{flatten_head_forward.1} parent=1 // pred_fallthru
      _
    %v15 = vld [vmem:[%s0] sm:$0xff]
    %v16 = vld [vmem:[%s0 + $0x8] sm:$0xff]
    %v17 = vld [vmem:[%s1] sm:$0xff]
    %v18 = vld [vmem:[%s1 + $0x8] sm:$0xff]
    %v19 = vld [vmem:[%s1 + $0x10] sm:$0xff]
    %v20 = vld [vmem:[%s1 + $0x18] sm:$0xff]
    %v21 = vld [vmem:[%s1 + $0x20] sm:$0xff]
    %v22 = vld [vmem:[%s1 + $0x28] sm:$0xff]
    %v23 = vld [vmem:[%s1 + $0x30] sm:$0xff]
    %v24 = vld [vmem:[%s1 + $0x38] sm:$0xff]
    %v25 = vld [vmem:[%s1 + $0x40] sm:$0xff]
    %v26 = vld [vmem:[%s1 + $0x48] sm:$0xff]
    %v27 = vld [vmem:[%s1 + $0x50] sm:$0xff]
    %v28 = vld [vmem:[%s1 + $0x58] sm:$0xff]
    %v29 = vld [vmem:[%s1 + $0x60] sm:$0xff]
    %v30 = vld [vmem:[%s1 + $0x68] sm:$0xff]
    %v31 = vld [vmem:[%s1 + $0x70] sm:$0xff]
    %v32 = vld [vmem:[%s1 + $0x78] sm:$0xff]
    %v33 = vld [vmem:[%s1 + $0x80] sm:$0xff]
    %v34 = vld [vmem:[%s1 + $0x88] sm:$0xff]
    %v35 = vld [vmem:[%s1 + $0x90] sm:$0xff]
    %v36 = vld [vmem:[%s1 + $0x98] sm:$0xff]
    %v37 = vld [vmem:[%s1 + $0xa0] sm:$0xff]
    %v38 = vld [vmem:[%s1 + $0xa8] sm:$0xff]
    %v39 = vld [vmem:[%s1 + $0xb0] sm:$0xff]
    %v40 = vld [vmem:[%s1 + $0xb8] sm:$0xff]
    %v41 = vld [vmem:[%s1 + $0xc0] sm:$0xff]
    %v42 = vld [vmem:[%s1 + $0xc8] sm:$0xff]
    %v43 = vld [vmem:[%s1 + $0xd0] sm:$0xff]
    %v44 = vld [vmem:[%s1 + $0xd8] sm:$0xff]
    %v45 = vld [vmem:[%s1 + $0xe0] sm:$0xff]
    %v46 = vld [vmem:[%s1 + $0xe8] sm:$0xff]
    %v47 = vld [vmem:[%s1 + $0xf0] sm:$0xff]
    %v48 = vld [vmem:[%s1 + $0xf8] sm:$0xff]
    %v49 = vld [vmem:[%s2] sm:$0x1]
    %v51 = vlaneseq
    %v52 = vshrl.u32 %v51, 7
    %v53 = vsub.s32 0, %v52
    %v54 = vrot.slane %v49, %v53
    %56 = vmatprep.subr.mxu0 0.0
    %57 = vmatpush1.msra.mxu0 %v32
    %58 = vmatprep.subr.mxu0 0.0
    %59 = vmatpush1.msra.mxu0 %v31
    %60 = vmatprep.subr.mxu0 0.0
    %61 = vmatpush1.msra.mxu0 %v30
    %62 = vmatprep.subr.mxu0 0.0
    %63 = vmatpush1.msra.mxu0 %v29
    %64 = vmatprep.subr.mxu0 0.0
    %65 = vmatpush1.msra.mxu0 %v28
    %66 = vmatprep.subr.mxu0 0.0
    %67 = vmatpush1.msra.mxu0 %v27
    %68 = vmatprep.subr.mxu0 0.0
    %69 = vmatpush1.msra.mxu0 %v26
    %70 = vmatprep.subr.mxu0 0.0
    %71 = vmatpush1.msra.mxu0 %v25
    %72 = vmatprep.subr.mxu0 0.0
    %73 = vmatpush1.msra.mxu0 %v24
    %74 = vmatprep.subr.mxu0 0.0
    %75 = vmatpush1.msra.mxu0 %v23
    %76 = vmatprep.subr.mxu0 0.0
    %77 = vmatpush1.msra.mxu0 %v22
    %78 = vmatprep.subr.mxu0 0.0
    %79 = vmatpush1.msra.mxu0 %v21
    %80 = vmatprep.subr.mxu0 0.0
    %81 = vmatpush1.msra.mxu0 %v20
    %82 = vmatprep.subr.mxu0 0.0
    %83 = vmatpush1.msra.mxu0 %v19
    %84 = vmatprep.subr.mxu0 0.0
    %85 = vmatpush1.msra.mxu0 %v18
    %86 = vmatprep.subr.mxu0 0.0
    %87 = vmatpush1.msra.mxu0 %v17
    %88 = vmatprep.subr.mxu0 0.0
    %89 = vmatpush2.msra.mxu0 %v48
    %90 = vmatprep.subr.mxu0 0.0
    %91 = vmatpush2.msra.mxu0 %v47
    %92 = vmatprep.subr.mxu0 0.0
    %93 = vmatpush2.msra.mxu0 %v46
    %94 = vmatprep.subr.mxu0 0.0
    %95 = vmatpush2.msra.mxu0 %v45
    %96 = vmatprep.subr.mxu0 0.0
    %97 = vmatpush2.msra.mxu0 %v44
    %98 = vmatprep.subr.mxu0 0.0
    %99 = vmatpush2.msra.mxu0 %v43
    %100 = vmatprep.subr.mxu0 0.0
    %101 = vmatpush2.msra.mxu0 %v42
    %102 = vmatprep.subr.mxu0 0.0
    %103 = vmatpush2.msra.mxu0 %v41
    %104 = vmatprep.subr.mxu0 0.0
    %105 = vmatpush2.msra.mxu0 %v40
    %106 = vmatprep.subr.mxu0 0.0
    %107 = vmatpush2.msra.mxu0 %v39
    %108 = vmatprep.subr.mxu0 0.0
    %109 = vmatpush2.msra.mxu0 %v38
    %110 = vmatprep.subr.mxu0 0.0
    %111 = vmatpush2.msra.mxu0 %v37
    %112 = vmatprep.subr.mxu0 0.0
    %113 = vmatpush2.msra.mxu0 %v36
    %114 = vmatprep.subr.mxu0 0.0
    %115 = vmatpush2.msra.mxu0 %v35
    %116 = vmatprep.subr.mxu0 0.0
    %117 = vmatpush2.msra.mxu0 %v34
    %118 = vmatprep.subr.mxu0 0.0
    %119 = vmatpush2.msra.mxu0 %v33
    %120 = vmatprep.mubr.f32.mxu0 %v16
    %121 = vmatmul.mubr.f32.gmra.mxu0 %v15
    %v122 = vpop.f32.mrf.mxu0
    %v123 = vadd.f32 %v54, %v122
    %v124 = vpop.f32.mrf.mxu0
    %125 = vdwg.mxu0
    %126 = vst [vmem:[#allocation2] sm:$0xff] %v123
    // Predicated region
    $region14: #{flatten_head_forward.1} parent=1 // pred_check
      _
    $region15: #{flatten_head_forward.1} parent=1 // pred_check_branch
      %128 = sbr.rel (0) target = $region17
    $region16: #{flatten_head_forward.1} parent=1 // pred_region
      %s130 = ssub.s32 128, 128
      %131 = vsyncadd [#allocation3], %s130
      %s133 = sshll.u32 [#allocation2], 4
      %s134 = int_to_ptr.vmem [resolvable:$true] %s133
      %136 = dma.vmem_to_hbm [thread:$0]  %s134, 128, %s3, [#allocation3]
    $region17: #{flatten_head_forward.1} parent=1 // pred_fallthru
      _
    // Predicated region
    $region18: #{flatten_head_forward.1} parent=1 // pred_check
      _
    $region19: #{flatten_head_forward.1} parent=1 // pred_check_branch
      %138 = sbr.rel (0) target = $region21
    $region20: #{flatten_head_forward.1} parent=1 // pred_region
      %139 = dma.done [#allocation3], 128
    $region21: #{flatten_head_forward.1} parent=1 // pred_fallthru
      _
    %140 = vsyncpa [#allocation3], 1

</llo_original>
